<compile_context>
chip_gen: v7x
topology: tpu7x:2x2x1
jax: 0.10.0
libtpu: 0.0.40
codegen_flags: <defaults>
</compile_context>

<pallas_src>
import functools

import jax
import jax.numpy as jnp
from jax.experimental import pallas as pl
from jax.experimental.pallas import tpu as pltpu


def _round_up(a, b):
    return (a + b - 1) // b * b


def _fc_block_kernel(seed_ref, x_ref, w_ref, b_ref, o_ref, *acc_scratch,
                     nk, m_axis, n_axis, block_m, block_n,
                     dropout_prob, training, compute_dtype, f32_matmul,
                     use_hw_prng):
    """One (block_m, block_n) output tile of relu(x @ W + b) with inverted dropout."""
    x = x_ref[...].astype(compute_dtype)          # (block_m, block_k)
    w = w_ref[...].astype(compute_dtype)          # (block_k, block_n)  (K, N) layout
    part = jnp.dot(
        x, w, preferred_element_type=jnp.float32,
        precision=(jax.lax.Precision.HIGHEST if f32_matmul else None))

    def epilogue(acc):                            # acc: (block_m, block_n) f32
        y = acc + b_ref[...]                      # bias broadcast (1, block_n)
        y = jnp.maximum(y, 0.0)                   # ReLU
        if training and dropout_prob > 0.0:
            # keep element iff 32 uniform random bits >= round(p * 2^32)
            thr = min(int(round(dropout_prob * 4294967296.0)), 4294967295)
            if use_hw_prng:
                pltpu.prng_seed(seed_ref[0], pl.program_id(m_axis),
                                pl.program_id(n_axis))
                gm = _round_up(block_m, 8)
                gn = _round_up(block_n, 128)
                bits = pltpu.bitcast(pltpu.prng_random_bits((gm, gn)), jnp.uint32)
                if (gm, gn) != (block_m, block_n):
                    bits = bits[:block_m, :block_n]
            else:
                # Interpret-mode fallback: counter-based hash. Row/col partial
                # hashes on (bm,1)/(1,bn); only the finalizer touches the tile.
                mi = pl.program_id(m_axis)
                ni = pl.program_id(n_axis)
                rows = (jax.lax.broadcasted_iota(jnp.int32, (block_m, 1), 0)
                        + mi * block_m).astype(jnp.uint32)
                cols = (jax.lax.broadcasted_iota(jnp.int32, (1, block_n), 1)
                        + ni * block_n).astype(jnp.uint32)
                r = rows * jnp.uint32(0x9E3779B1) + seed_ref[0].astype(jnp.uint32)
                c = cols * jnp.uint32(0x85EBCA77)
                z = r + c
                z = (z ^ (z >> 16)) * jnp.uint32(0x7FEB352D)
                z = (z ^ (z >> 15)) * jnp.uint32(0x846CA68B)
                bits = z ^ (z >> 16)
            keep = bits >= jnp.uint32(thr)
            y = jnp.where(keep, y, 0.0) * jnp.float32(1.0 / (1.0 - dropout_prob))
        return y.astype(o_ref.dtype)

    if nk == 1:
        o_ref[...] = epilogue(part)
    else:
        acc_ref = acc_scratch[0]
        kk = pl.program_id(2)

        @pl.when(kk == 0)
        def _():
            acc_ref[...] = jnp.zeros_like(acc_ref)

        acc_ref[...] += part

        @pl.when(kk == nk - 1)
        def _():
            o_ref[...] = epilogue(acc_ref[...])


def fc_block(x, weight, bias, *, dropout_prob=0.5, training=True, seed=0,
             compute_dtype=jnp.bfloat16, out_dtype=None,
             block_m=256, block_n=512):
    """FCBlock.forward: Linear -> ReLU -> Dropout.

    x:      (..., in_features)
    weight: (out_features, in_features)  -- PyTorch nn.Linear layout
    bias:   (out_features,)
    seed:   runtime scalar (int or int array); vary it per layer / training step.
    """
    if not (0.0 <= float(dropout_prob) < 1.0):
        raise ValueError("dropout_prob must be in [0, 1).")

    n, k = weight.shape
    lead = x.shape[:-1]
    out_dtype = jnp.dtype(out_dtype) if out_dtype is not None else x.dtype
    x2 = x.reshape(-1, k)
    m = x2.shape[0]

    compute_dtype = jnp.dtype(compute_dtype)
    f32_matmul = compute_dtype == jnp.dtype(jnp.float32)
    cb = compute_dtype.itemsize
    ob = jnp.dtype(out_dtype).itemsize
    on_tpu = jax.default_backend() == "tpu"

    # ---- generation-aware VMEM budget (v5e/v6e: 128 MiB, v7x: 64 MiB physical) ----
    vmem_cap = 128 * 1024 * 1024
    if on_tpu:
        try:
            vmem_cap = int(getattr(pltpu.get_tpu_info(), "vmem_capacity_bytes",
                                   vmem_cap))
        except Exception:
            pass
    vmem_limit = min(vmem_cap * 3 // 4, 100 * 1024 * 1024)
    tile_budget = int(vmem_limit * 0.65)

    # ---- tile plan: sublane multiple of 8 / lane multiple of 128, or full dim ----
    tm = min(max(8, _round_up(block_m, 8)), _round_up(m, 8))
    if tm > m:
        tm = m                                   # full-dim block (ragged handled by Pallas)
    tn = min(max(128, _round_up(block_n, 128)), _round_up(n, 128))
    if tn > n:
        tn = n
    m_tiles = pl.cdiv(m, tm)
    n_tiles = pl.cdiv(n, tn)

    # Keep K un-tiled while double-buffered (tm,K)+(K,tn) tiles fit the budget;
    # otherwise tile K ("arbitrary" axis + f32 VMEM accumulator) and pad K.
    fixed = 2 * tm * tn * ob + 2 * tn * 4
    tk_cap = max(128, (tile_budget - fixed) // (2 * (tm + tn) * cb))
    if k <= tk_cap:
        tk, nk, k_pad = k, 1, k
    else:
        fixed += tm * tn * 4                      # accumulator scratch
        tk_cap = max(128, (tile_budget - fixed) // (2 * (tm + tn) * cb))
        tk = max(128, tk_cap // 128 * 128)
        nk = pl.cdiv(k, tk)
        k_pad = nk * tk

    # ---- loop order: keep the larger operand resident, stream the smaller one ----
    if nk > 1:
        n_outer = True                            # both operands re-stream when K is tiled
    else:
        n_outer = (n_tiles * m * k + n * k) <= (m_tiles * n * k + m * k)
    if n_outer:
        grid = (n_tiles, m_tiles, nk)
        x_map = lambda j, i, kk, *_: (i, kk)
        w_map = lambda j, i, kk, *_: (kk, j)
        b_map = lambda j, i, kk, *_: (0, j)
        o_map = lambda j, i, kk, *_: (i, j)
        n_axis, m_axis = 0, 1
    else:
        grid = (m_tiles, n_tiles, nk)
        x_map = lambda i, j, kk, *_: (i, kk)
        w_map = lambda i, j, kk, *_: (kk, j)
        b_map = lambda i, j, kk, *_: (0, j)
        o_map = lambda i, j, kk, *_: (i, j)
        n_axis, m_axis = 1, 0

    x_restreams = n_tiles if (n_outer or nk > 1) else 1
    w_restreams = m_tiles if ((not n_outer) or nk > 1) else 1

    # ---- operand prep (minimal wrapper HBM passes) ----
    # W: single fused transpose+cast pass -> canonical (K, N) MXU layout.
    w_t = weight.T.astype(compute_dtype)
    # x: pre-cast only if it will be re-streamed; otherwise cast inside the kernel.
    x_arr = (x2.astype(compute_dtype)
             if (x_restreams > 1 and x2.dtype != compute_dtype) else x2)
    b2 = bias.astype(jnp.float32).reshape(1, n)
    if k_pad != k:                                # only on the (rare) K-tiled path
        x_arr = jnp.pad(x_arr, ((0, 0), (0, k_pad - k)))
        w_t = jnp.pad(w_t, ((0, k_pad - k), (0, 0)))

    if isinstance(seed, int):
        seed = seed % (1 << 31)
    seed_arr = jnp.asarray(seed, dtype=jnp.int32).reshape((1,))

    kernel = functools.partial(
        _fc_block_kernel,
        nk=nk, m_axis=m_axis, n_axis=n_axis, block_m=tm, block_n=tn,
        dropout_prob=float(dropout_prob), training=bool(training),
        compute_dtype=compute_dtype, f32_matmul=f32_matmul,
        use_hw_prng=on_tpu)

    compiler_params = None
    if on_tpu:
        compiler_params = pltpu.CompilerParams(
            dimension_semantics=("parallel", "parallel", "arbitrary"),
            vmem_limit_bytes=int(vmem_limit))

    cost = pl.CostEstimate(
        flops=2 * m * n * k,
        bytes_accessed=int(x_restreams * m * k_pad * x_arr.dtype.itemsize
                           + w_restreams * k_pad * n * w_t.dtype.itemsize
                           + m * n * ob + n * 4),
        transcendentals=0)

    grid_spec = pltpu.PrefetchScalarGridSpec(
        num_scalar_prefetch=1,
        grid=grid,
        in_specs=[
            pl.BlockSpec((tm, tk), x_map),        # x tile
            pl.BlockSpec((tk, tn), w_map),        # W tile, (K, N) layout
            pl.BlockSpec((1, tn), b_map),         # bias tile
        ],
        out_specs=pl.BlockSpec((tm, tn), o_map),
        scratch_shapes=([pltpu.VMEM((tm, tn), jnp.float32)] if nk > 1 else []),
    )

    out = pl.pallas_call(
        kernel,
        out_shape=jax.ShapeDtypeStruct((m, n), out_dtype),
        grid_spec=grid_spec,
        compiler_params=compiler_params,
        cost_estimate=cost,
    )(seed_arr, x_arr, w_t, b2)

    return out.reshape(*lead, n)


if __name__ == "__main__":
    key = jax.random.PRNGKey(0)
    k_x, k_w, k_b = jax.random.split(key, 3)

    # Small shapes: batch=2, seq=8, in_features=32, out_features=64.
    in_features, out_features = 32, 64
    dropout_prob = 0.1

    x = jax.random.normal(k_x, (2, 8, in_features), dtype=jnp.float32)

    # PyTorch-style Linear init: uniform(-1/sqrt(K), 1/sqrt(K)).
    bound = 1.0 / (in_features ** 0.5)
    weight = jax.random.uniform(k_w, (out_features, in_features),
                                minval=-bound, maxval=bound, dtype=jnp.float32)
    bias = jax.random.uniform(k_b, (out_features,),
                              minval=-bound, maxval=bound, dtype=jnp.float32)

    ref = jnp.maximum(x @ weight.T + bias, 0.0)

    # 1) Eval mode, full-f32 matmul: tight check against plain-JAX reference.
    out_eval_f32 = jax.block_until_ready(
        fc_block(x, weight, bias, dropout_prob=dropout_prob, training=False,
                 compute_dtype=jnp.float32))
    assert out_eval_f32.shape == (2, 8, out_features)
    assert jnp.allclose(out_eval_f32, ref, atol=1e-4, rtol=1e-4), "f32 eval mismatch"

    # 2) Eval mode, default bf16 operands + f32 accumulation (fast path).
    out_eval_bf16 = jax.block_until_ready(
        fc_block(x, weight, bias, dropout_prob=dropout_prob, training=False))
    assert jnp.allclose(out_eval_bf16, ref, atol=5e-2, rtol=5e-2), "bf16 eval mismatch"

    # 3) Training mode (dropout active), f32 path so kept values are comparable.
    out_train = jax.block_until_ready(
        fc_block(x, weight, bias, dropout_prob=dropout_prob, training=True,
                 seed=1234, compute_dtype=jnp.float32))
    scale = 1.0 / (1.0 - dropout_prob)
    kept = out_train != 0.0
    diff = jnp.where(kept, out_train - out_eval_f32 * scale, 0.0)
    assert float(jnp.max(jnp.abs(diff))) < 1e-4, "dropout kept-value mismatch"
    pos = out_eval_f32 > 0.0
    n_pos = jnp.maximum(jnp.sum(pos), 1)
    drop_frac = float(jnp.sum(jnp.logical_and(pos, ~kept)) / n_pos)
    assert 0.005 <= drop_frac <= 0.35, f"dropout rate off: {drop_frac}"

    # 4) Seed is a runtime scalar: a different seed reuses the compiled kernel
    #    and yields a different mask.
    out_train2 = jax.block_until_ready(
        fc_block(x, weight, bias, dropout_prob=dropout_prob, training=True,
                 seed=999, compute_dtype=jnp.float32))
    assert bool(jnp.any(out_train2 != out_train)), "seed change had no effect"

    print("KERNEL_OK")
</pallas_src>

<mosaic_0001>
module attributes {stable_mosaic.version = 11 : i64} {
  func.func @_fc_block_kernel(%arg0: i32, %arg1: i32, %arg2: i32, %arg3: memref<1xi32, #tpu.memory_space<smem>>, %arg4: memref<16x32xf32, #tpu.memory_space<vmem>>, %arg5: memref<32x64xf32, #tpu.memory_space<vmem>>, %arg6: memref<1x64xf32, #tpu.memory_space<vmem>>, %arg7: memref<16x64xf32, #tpu.memory_space<vmem>>) attributes {dimension_semantics = [#tpu.dimension_semantics<arbitrary>, #tpu.dimension_semantics<arbitrary>, #tpu.dimension_semantics<arbitrary>], iteration_bounds = array<i64: 1, 1, 1>, scalar_prefetch = 1 : i64, scratch_operands = 0 : i64, tpu.core_type = #tpu.core_type<tc>, window_params = [{transform_indices = @transform_0, window_bounds = array<i64: 16, 32>}, {transform_indices = @transform_1, window_bounds = array<i64: 32, 64>}, {transform_indices = @transform_2, window_bounds = array<i64: 1, 64>}, {transform_indices = @transform_3, window_bounds = array<i64: 16, 64>}]} {
    %c0 = arith.constant 0 : index
    %c0_0 = arith.constant 0 : index
    %0 = vector.load %arg4[%c0, %c0_0] : memref<16x32xf32, #tpu.memory_space<vmem>>, vector<16x32xf32>
    %c0_1 = arith.constant 0 : index
    %c0_2 = arith.constant 0 : index
    %1 = vector.load %arg5[%c0_1, %c0_2] : memref<32x64xf32, #tpu.memory_space<vmem>>, vector<32x64xf32>
    %cst = arith.constant dense<0.000000e+00> : vector<16x64xf32>
    %2 = tpu.matmul %0, %1, %cst {dimension_numbers = #tpu.dot_dimension_numbers<[1], [0], [0], [1], [0, 0, 1, 1], [], []>, precision = #tpu.contract_precision<fp32>} : vector<16x32xf32>, vector<32x64xf32>, vector<16x64xf32> -> vector<16x64xf32>
    %c0_3 = arith.constant 0 : index
    %c0_4 = arith.constant 0 : index
    %3 = vector.load %arg6[%c0_3, %c0_4] : memref<1x64xf32, #tpu.memory_space<vmem>>, vector<1x64xf32>
    %4 = vector.broadcast %3 : vector<1x64xf32> to vector<16x64xf32>
    %5 = arith.addf %2, %4 : vector<16x64xf32>
    %cst_5 = arith.constant 0.000000e+00 : f32
    %6 = vector.broadcast %cst_5 : f32 to vector<16x64xf32>
    %7 = arith.maximumf %5, %6 : vector<16x64xf32>
    %c0_6 = arith.constant 0 : index
    %c0_7 = arith.constant 0 : index
    %8 = vector.load %arg7[%c0_6, %c0_7] : memref<16x64xf32, #tpu.memory_space<vmem>>, vector<16x64xf32>
    tpu.vector_store %arg7[%c0_6, %c0_7], %7 {strides = array<i32>} : memref<16x64xf32, #tpu.memory_space<vmem>>, vector<16x64xf32>,
    return
  }
  func.func @transform_0(%arg0: i32, %arg1: i32, %arg2: i32, %arg3: memref<1xi32, #tpu.memory_space<smem>>) -> (i32, i32) {
    %c0_i32 = arith.constant 0 : i32
    return %arg1, %arg2 : i32, i32
  }
  func.func @transform_1(%arg0: i32, %arg1: i32, %arg2: i32, %arg3: memref<1xi32, #tpu.memory_space<smem>>) -> (i32, i32) {
    %c0_i32 = arith.constant 0 : i32
    return %arg2, %arg0 : i32, i32
  }
  func.func @transform_2(%arg0: i32, %arg1: i32, %arg2: i32, %arg3: memref<1xi32, #tpu.memory_space<smem>>) -> (i32, i32) {
    %c0_i32 = arith.constant 0 : i32
    %c0_i32_0 = arith.constant 0 : i32
    return %c0_i32, %arg0 : i32, i32
  }
  func.func @transform_3(%arg0: i32, %arg1: i32, %arg2: i32, %arg3: memref<1xi32, #tpu.memory_space<smem>>) -> (i32, i32) {
    %c0_i32 = arith.constant 0 : i32
    return %arg1, %arg0 : i32, i32
  }
}

</mosaic_0001>

<llo_original>
// kernel: tpu_custom_call.1
$region0: #{tpu_custom_call.1}
  #allocation0 [shape = 'u32[]', space=smem, size = 0x4, offset = 0x4, fixed_abs, tag = 'smem constant byte address 0x4 - core index']
  #allocation1 [shape = 'u32[144,128]{1,0:T(1,128)}', space=vmem, size = 0x12000, scoped, tag = 'internal scratch']
  #allocation2 [shape = 's32[1]{0}', space=sflag, size = 0x4, scoped, tag = 'scoped memory for tpu_custom_call.1']
  #allocation3 [shape = 's32[1]{0:T(128)S(6)}', space=smem, size = 0x200, scoped, tag = 'prefetched SMEM operand 0']
  %s0 = inlined_call_operand.<no memory space> [shape: s32[1], index: 0, kind: input, shape index: {}]
  %s1 = inlined_call_operand.hbm [shape: f32[16,32], index: 1, kind: input, shape index: {}]
  %s2 = inlined_call_operand.hbm [shape: f32[32,64], index: 2, kind: input, shape index: {}]
  %s3 = inlined_call_operand.vmem [shape: f32[1,64], index: 3, kind: input, shape index: {}]
  %s4 = inlined_call_operand.hbm [shape: f32[16,64], index: 4, kind: output, shape index: {}]
  %s5 = sld [smem:[#allocation0]]
  $region30: #{tpu_custom_call.1} parent=0
    _
  %s7 = ssub.s32 1, %s5
  %s8 = scalar_select 0, %s7, %s5
  %9 = sst [smem:[#allocation3]] %s0
  $region1: #{tpu_custom_call.1} parent=0
    #allocation4 [shape = 'u8[8192]{0}', space=vmem, size = 0x2000, scoped, tag = 'input window, operand 1, single buffered']
    #allocation5 [shape = 's32[1]{0}', space=sflag, size = 0x4, scoped, tag = 'scoped memory for tpu_custom_call.1']
    #allocation6 [shape = 's32[1]{0}', space=sflag, size = 0x4, scoped, tag = 'scoped memory for tpu_custom_call.1']
    #allocation7 [shape = 'u8[16384]{0}', space=vmem, size = 0x4000, scoped, tag = 'input window, operand 2, single buffered']
    #allocation8 [shape = 's32[1]{0}', space=sflag, size = 0x4, scoped, tag = 'scoped memory for tpu_custom_call.1']
    #allocation9 [shape = 'u8[8192]{0}', space=vmem, size = 0x2000, scoped, tag = 'output window, operand 0, single buffered']
    %10 = vsyncpa [#allocation5], 0
    %11 = vsyncpa [#allocation8], 0
    %12 = vsyncpa [#allocation6], 0
    // Predicated region
    $region2: #{tpu_custom_call.1} parent=1 // pred_check
      _
    $region3: #{tpu_custom_call.1} parent=1 // pred_check_branch
      %14 = sbr.rel (0) target = $region5
    $region4: #{tpu_custom_call.1} parent=1 // pred_region
      %s16 = ssub.s32 256, 256
      %17 = vsyncadd [#allocation5], %s16
      %s18 = sshll.u32 [#allocation4], 4
      %s19 = int_to_ptr.vmem [resolvable:$true] %s18
      %24 = dma.hbm_to_vmem [thread:$0]  %s1, 256, %s19, [#allocation5], 128, 128, 8
    $region5: #{tpu_custom_call.1} parent=1 // pred_fallthru
      _
    // Predicated region
    $region6: #{tpu_custom_call.1} parent=1 // pred_check
      _
    $region7: #{tpu_custom_call.1} parent=1 // pred_check_branch
      %26 = sbr.rel (0) target = $region9
    $region8: #{tpu_custom_call.1} parent=1 // pred_region
      %s28 = ssub.s32 512, 512
      %29 = vsyncadd [#allocation8], %s28
      %s30 = sshll.u32 [#allocation7], 4
      %s31 = int_to_ptr.vmem [resolvable:$true] %s30
      %36 = dma.hbm_to_vmem [thread:$0]  %s2, 512, %s31, [#allocation8], 128, 128, 8
    $region9: #{tpu_custom_call.1} parent=1 // pred_fallthru
      _
    // Predicated region
    $region10: #{tpu_custom_call.1} parent=1 // pred_check
      _
    $region11: #{tpu_custom_call.1} parent=1 // pred_check_branch
      %38 = sbr.rel (0) target = $region13
    $region12: #{tpu_custom_call.1} parent=1 // pred_region
      _
    $region13: #{tpu_custom_call.1} parent=1 // pred_fallthru
      _
    // Predicated region
    $region14: #{tpu_custom_call.1} parent=1 // pred_check
      _
    $region15: #{tpu_custom_call.1} parent=1 // pred_check_branch
      %40 = sbr.rel (0) target = $region17
    $region16: #{tpu_custom_call.1} parent=1 // pred_region
      %41 = dma.done [#allocation5], 256
    $region17: #{tpu_custom_call.1} parent=1 // pred_fallthru
      _
    // Predicated region
    $region18: #{tpu_custom_call.1} parent=1 // pred_check
      _
    $region19: #{tpu_custom_call.1} parent=1 // pred_check_branch
      %43 = sbr.rel (0) target = $region21
    $region20: #{tpu_custom_call.1} parent=1 // pred_region
      %44 = dma.done [#allocation8], 512
    $region21: #{tpu_custom_call.1} parent=1 // pred_fallthru
      _
    %v45 = vld [vmem:[#allocation4] sm:$0xff]
    %v46 = vld [vmem:[#allocation4 + $0x8] sm:$0xff]
    %v47 = vld [vmem:[#allocation7] sm:$0xff]
    %v48 = vld [vmem:[#allocation7 + $0x8] sm:$0xff]
    %v49 = vld [vmem:[#allocation7 + $0x10] sm:$0xff]
    %v50 = vld [vmem:[#allocation7 + $0x18] sm:$0xff]
    %v51 = vld [vmem:[%s3] sm:$0x1]
    %v53 = vlaneseq
    %v54 = vshrl.u32 %v53, 7
    %v55 = vsub.s32 0, %v54
    %v56 = vrot.slane %v51, %v55
    %vm58 = vcmask 261120
    %v60 = vsel %vm58, %v45, 0
    %v63 = vsel %vm58, %v46, 0
    %65 = vmatprep.subr.mxu0 0.0
    %v66 = vand.u32 %v47, 4294901760
    %67 = vmatpush1.msra.mxu0 %v66
    %68 = vmatprep.subr.mxu0 0.0
    %v69 = vand.u32 %v48, 4294901760
    %70 = vmatpush1.msra.mxu0 %v69
    %71 = vmatprep.subr.mxu0 0.0
    %v72 = vand.u32 %v49, 4294901760
    %73 = vmatpush1.msra.mxu0 %v72
    %74 = vmatprep.subr.mxu0 0.0
    %v75 = vand.u32 %v50, 4294901760
    %76 = vmatpush1.msra.mxu0 %v75
    %77 = vmatprep.subr.mxu0 0.0
    %78 = vmatpush1.msra.mxu0 0.0
    %79 = vmatprep.subr.mxu0 0.0
    %80 = vmatpush1.msra.mxu0 0.0
    %81 = vmatprep.subr.mxu0 0.0
    %82 = vmatpush1.msra.mxu0 0.0
    %83 = vmatprep.subr.mxu0 0.0
    %84 = vmatpush1.msra.mxu0 0.0
    %85 = vmatprep.subr.mxu0 0.0
    %86 = vmatpush1.msra.mxu0 0.0
    %87 = vmatprep.subr.mxu0 0.0
    %88 = vmatpush1.msra.mxu0 0.0
    %89 = vmatprep.subr.mxu0 0.0
    %90 = vmatpush1.msra.mxu0 0.0
    %91 = vmatprep.subr.mxu0 0.0
    %92 = vmatpush1.msra.mxu0 0.0
    %93 = vmatprep.subr.mxu0 0.0
    %94 = vmatpush1.msra.mxu0 0.0
    %95 = vmatprep.subr.mxu0 0.0
    %96 = vmatpush1.msra.mxu0 0.0
    %97 = vmatprep.subr.mxu0 0.0
    %98 = vmatpush1.msra.mxu0 0.0
    %99 = vmatprep.subr.mxu0 0.0
    %100 = vmatpush1.msra.mxu0 0.0
    %101 = vmatprep.subr.mxu0 0.0
    %102 = vmatpush1.msra.mxu0 0.0
    %103 = vmatprep.subr.mxu0 0.0
    %104 = vmatpush1.msra.mxu0 0.0
    %105 = vmatprep.subr.mxu0 0.0
    %106 = vmatpush1.msra.mxu0 0.0
    %107 = vmatprep.subr.mxu0 0.0
    %108 = vmatpush1.msra.mxu0 0.0
    %109 = vmatprep.subr.mxu0 0.0
    %110 = vmatpush1.msra.mxu0 0.0
    %111 = vmatprep.subr.mxu0 0.0
    %112 = vmatpush1.msra.mxu0 0.0
    %113 = vmatprep.subr.mxu0 0.0
    %114 = vmatpush1.msra.mxu0 0.0
    %115 = vmatprep.subr.mxu0 0.0
    %116 = vmatpush1.msra.mxu0 0.0
    %117 = vmatprep.subr.mxu0 0.0
    %118 = vmatpush1.msra.mxu0 0.0
    %119 = vmatprep.subr.mxu0 0.0
    %120 = vmatpush1.msra.mxu0 0.0
    %121 = vmatprep.subr.mxu0 0.0
    %122 = vmatpush1.msra.mxu0 0.0
    %123 = vmatprep.subr.mxu0 0.0
    %124 = vmatpush1.msra.mxu0 0.0
    %125 = vmatprep.subr.mxu0 0.0
    %126 = vmatpush1.msra.mxu0 0.0
    %127 = vmatprep.subr.mxu0 0.0
    %128 = vmatpush1.msra.mxu0 0.0
    %129 = vmatprep.subr.mxu0 0.0
    %130 = vmatpush1.msra.mxu0 0.0
    %131 = vmatprep.subr.mxu0 0.0
    %132 = vmatpush1.msra.mxu0 0.0
    %133 = vmatprep.mubr.f32.mxu0 0.0
    %v134 = vand.u32 %v60, 4294901760
    %v135 = vsub.f32 %v60, %v134
    %v136 = vand.u32 %v135, 4294901760
    %v137 = vsub.f32 %v135, %v136
    %v138 = vand.u32 %v137, 4294901760
    %139 = vmatmul.mubr.f32.gmra.mrb[0].mxu0 %v138
    %v140 = vpop.f32.mrb[0].mxu0
    %v141 = vadd.f32 %v56, %v140
    %v142 = vpop.f32.mrb[0].mxu0
    %143 = vmatprep.mubr.f32.mxu0 0.0
    %v144 = vand.u32 %v63, 4294901760
    %v145 = vsub.f32 %v63, %v144
    %v146 = vand.u32 %v145, 4294901760
    %v147 = vsub.f32 %v145, %v146
    %v148 = vand.u32 %v147, 4294901760
    %149 = vmatmul.mubr.f32.gmra.mrb[0].mxu0 %v148
    %v150 = vpop.f32.mrb[0].mxu0
    %v151 = vadd.f32 %v56, %v150
    %v152 = vpop.f32.mrb[0].mxu0
    %153 = vdwg.mxu0
    %154 = vmatprep.subr.mxu0 0.0
    %v155 = vand.u32 %v47, 4294901760
    %v156 = vsub.f32 %v47, %v155
    %v157 = vand.u32 %v156, 4294901760
    %v158 = vsub.f32 %v156, %v157
    %v159 = vand.u32 %v158, 4294901760
    %160 = vmatpush1.msra.mxu0 %v159
    %161 = vmatprep.subr.mxu0 0.0
    %v162 = vand.u32 %v48, 4294901760
    %v163 = vsub.f32 %v48, %v162
    %v164 = vand.u32 %v163, 4294901760
    %v165 = vsub.f32 %v163, %v164
    %v166 = vand.u32 %v165, 4294901760
    %167 = vmatpush1.msra.mxu0 %v166
    %168 = vmatprep.subr.mxu0 0.0
    %v169 = vand.u32 %v49, 4294901760
    %v170 = vsub.f32 %v49, %v169
    %v171 = vand.u32 %v170, 4294901760
    %v172 = vsub.f32 %v170, %v171
    %v173 = vand.u32 %v172, 4294901760
    %174 = vmatpush1.msra.mxu0 %v173
    %175 = vmatprep.subr.mxu0 0.0
    %v176 = vand.u32 %v50, 4294901760
    %v177 = vsub.f32 %v50, %v176
    %v178 = vand.u32 %v177, 4294901760
    %v179 = vsub.f32 %v177, %v178
    %v180 = vand.u32 %v179, 4294901760
    %181 = vmatpush1.msra.mxu0 %v180
    %182 = vmatprep.subr.mxu0 0.0
    %183 = vmatpush1.msra.mxu0 0.0
    %184 = vmatprep.subr.mxu0 0.0
    %185 = vmatpush1.msra.mxu0 0.0
    %186 = vmatprep.subr.mxu0 0.0
    %187 = vmatpush1.msra.mxu0 0.0
    %188 = vmatprep.subr.mxu0 0.0
    %189 = vmatpush1.msra.mxu0 0.0
    %190 = vmatprep.subr.mxu0 0.0
    %191 = vmatpush1.msra.mxu0 0.0
    %192 = vmatprep.subr.mxu0 0.0
    %193 = vmatpush1.msra.mxu0 0.0
    %194 = vmatprep.subr.mxu0 0.0
    %195 = vmatpush1.msra.mxu0 0.0
    %196 = vmatprep.subr.mxu0 0.0
    %197 = vmatpush1.msra.mxu0 0.0
    %198 = vmatprep.subr.mxu0 0.0
    %199 = vmatpush1.msra.mxu0 0.0
    %200 = vmatprep.subr.mxu0 0.0
    %201 = vmatpush1.msra.mxu0 0.0
    %202 = vmatprep.subr.mxu0 0.0
    %203 = vmatpush1.msra.mxu0 0.0
    %204 = vmatprep.subr.mxu0 0.0
    %205 = vmatpush1.msra.mxu0 0.0
    %206 = vmatprep.subr.mxu0 0.0
    %207 = vmatpush1.msra.mxu0 0.0
    %208 = vmatprep.subr.mxu0 0.0
    %209 = vmatpush1.msra.mxu0 0.0
    %210 = vmatprep.subr.mxu0 0.0
    %211 = vmatpush1.msra.mxu0 0.0
    %212 = vmatprep.subr.mxu0 0.0
    %213 = vmatpush1.msra.mxu0 0.0
    %214 = vmatprep.subr.mxu0 0.0
    %215 = vmatpush1.msra.mxu0 0.0
    %216 = vmatprep.subr.mxu0 0.0
    %217 = vmatpush1.msra.mxu0 0.0
    %218 = vmatprep.subr.mxu0 0.0
    %219 = vmatpush1.msra.mxu0 0.0
    %220 = vmatprep.subr.mxu0 0.0
    %221 = vmatpush1.msra.mxu0 0.0
    %222 = vmatprep.subr.mxu0 0.0
    %223 = vmatpush1.msra.mxu0 0.0
    %224 = vmatprep.subr.mxu0 0.0
    %225 = vmatpush1.msra.mxu0 0.0
    %226 = vmatprep.subr.mxu0 0.0
    %227 = vmatpush1.msra.mxu0 0.0
    %228 = vmatprep.subr.mxu0 0.0
    %229 = vmatpush1.msra.mxu0 0.0
    %230 = vmatprep.subr.mxu0 0.0
    %231 = vmatpush1.msra.mxu0 0.0
    %232 = vmatprep.subr.mxu0 0.0
    %233 = vmatpush1.msra.mxu0 0.0
    %234 = vmatprep.subr.mxu0 0.0
    %235 = vmatpush1.msra.mxu0 0.0
    %236 = vmatprep.subr.mxu0 0.0
    %237 = vmatpush1.msra.mxu0 0.0
    %238 = vmatprep.mubr.f32.mxu0 0.0
    %v239 = vand.u32 %v60, 4294901760
    %240 = vmatmul.mubr.f32.gmra.mrb[0].mxu0 %v239
    %v241 = vpop.f32.mrb[0].mxu0
    %v242 = vadd.f32 %v141, %v241
    %v243 = vpop.f32.mrb[0].mxu0
    %244 = vmatprep.mubr.f32.mxu0 0.0
    %v245 = vand.u32 %v63, 4294901760
    %246 = vmatmul.mubr.f32.gmra.mrb[0].mxu0 %v245
    %v247 = vpop.f32.mrb[0].mxu0
    %v248 = vadd.f32 %v151, %v247
    %v249 = vpop.f32.mrb[0].mxu0
    %250 = vdwg.mxu0
    %251 = vmatprep.subr.mxu0 0.0
    %v252 = vand.u32 %v47, 4294901760
    %v253 = vsub.f32 %v47, %v252
    %254 = vmatpush1.msra.mxu0 %v253
    %255 = vmatprep.subr.mxu0 0.0
    %v256 = vand.u32 %v48, 4294901760
    %v257 = vsub.f32 %v48, %v256
    %258 = vmatpush1.msra.mxu0 %v257
    %259 = vmatprep.subr.mxu0 0.0
    %v260 = vand.u32 %v49, 4294901760
    %v261 = vsub.f32 %v49, %v260
    %262 = vmatpush1.msra.mxu0 %v261
    %263 = vmatprep.subr.mxu0 0.0
    %v264 = vand.u32 %v50, 4294901760
    %v265 = vsub.f32 %v50, %v264
    %266 = vmatpush1.msra.mxu0 %v265
    %267 = vmatprep.subr.mxu0 0.0
    %268 = vmatpush1.msra.mxu0 0.0
    %269 = vmatprep.subr.mxu0 0.0
    %270 = vmatpush1.msra.mxu0 0.0
    %271 = vmatprep.subr.mxu0 0.0
    %272 = vmatpush1.msra.mxu0 0.0
    %273 = vmatprep.subr.mxu0 0.0
    %274 = vmatpush1.msra.mxu0 0.0
    %275 = vmatprep.subr.mxu0 0.0
    %276 = vmatpush1.msra.mxu0 0.0
    %277 = vmatprep.subr.mxu0 0.0
    %278 = vmatpush1.msra.mxu0 0.0
    %279 = vmatprep.subr.mxu0 0.0
    %280 = vmatpush1.msra.mxu0 0.0
    %281 = vmatprep.subr.mxu0 0.0
    %282 = vmatpush1.msra.mxu0 0.0
    %283 = vmatprep.subr.mxu0 0.0
    %284 = vmatpush1.msra.mxu0 0.0
    %285 = vmatprep.subr.mxu0 0.0
    %286 = vmatpush1.msra.mxu0 0.0
    %287 = vmatprep.subr.mxu0 0.0
    %288 = vmatpush1.msra.mxu0 0.0
    %289 = vmatprep.subr.mxu0 0.0
    %290 = vmatpush1.msra.mxu0 0.0
    %291 = vmatprep.subr.mxu0 0.0
    %292 = vmatpush1.msra.mxu0 0.0
    %293 = vmatprep.subr.mxu0 0.0
    %294 = vmatpush1.msra.mxu0 0.0
    %295 = vmatprep.subr.mxu0 0.0
    %296 = vmatpush1.msra.mxu0 0.0
    %297 = vmatprep.subr.mxu0 0.0
    %298 = vmatpush1.msra.mxu0 0.0
    %299 = vmatprep.subr.mxu0 0.0
    %300 = vmatpush1.msra.mxu0 0.0
    %301 = vmatprep.subr.mxu0 0.0
    %302 = vmatpush1.msra.mxu0 0.0
    %303 = vmatprep.subr.mxu0 0.0
    %304 = vmatpush1.msra.mxu0 0.0
    %305 = vmatprep.subr.mxu0 0.0
    %306 = vmatpush1.msra.mxu0 0.0
    %307 = vmatprep.subr.mxu0 0.0
    %308 = vmatpush1.msra.mxu0 0.0
    %309 = vmatprep.subr.mxu0 0.0
    %310 = vmatpush1.msra.mxu0 0.0
    %311 = vmatprep.subr.mxu0 0.0
    %312 = vmatpush1.msra.mxu0 0.0
    %313 = vmatprep.subr.mxu0 0.0
    %314 = vmatpush1.msra.mxu0 0.0
    %315 = vmatprep.subr.mxu0 0.0
    %316 = vmatpush1.msra.mxu0 0.0
    %317 = vmatprep.subr.mxu0 0.0
    %318 = vmatpush1.msra.mxu0 0.0
    %319 = vmatprep.subr.mxu0 0.0
    %320 = vmatpush1.msra.mxu0 0.0
    %321 = vmatprep.subr.mxu0 0.0
    %322 = vmatpush1.msra.mxu0 0.0
    %323 = vmatprep.mubr.f32.mxu0 0.0
    %v324 = vand.u32 %v60, 4294901760
    %v325 = vsub.f32 %v60, %v324
    %326 = vmatmul.mubr.f32.gmra.mrb[0].mxu0 %v325
    %v327 = vpop.f32.mrb[0].mxu0
    %v328 = vadd.f32 %v242, %v327
    %v329 = vpop.f32.mrb[0].mxu0
    %330 = vmatprep.mubr.f32.mxu0 0.0
    %v331 = vand.u32 %v63, 4294901760
    %v332 = vsub.f32 %v63, %v331
    %333 = vmatmul.mubr.f32.gmra.mrb[0].mxu0 %v332
    %v334 = vpop.f32.mrb[0].mxu0
    %v335 = vadd.f32 %v248, %v334
    %v336 = vpop.f32.mrb[0].mxu0
    %337 = vdwg.mxu0
    %338 = vmatprep.subr.mxu0 0.0
    %v339 = vand.u32 %v47, 4294901760
    %340 = vmatpush1.msra.mxu0 %v339
    %341 = vmatprep.subr.mxu0 0.0
    %v342 = vand.u32 %v48, 4294901760
    %343 = vmatpush1.msra.mxu0 %v342
    %344 = vmatprep.subr.mxu0 0.0
    %v345 = vand.u32 %v49, 4294901760
    %346 = vmatpush1.msra.mxu0 %v345
    %347 = vmatprep.subr.mxu0 0.0
    %v348 = vand.u32 %v50, 4294901760
    %349 = vmatpush1.msra.mxu0 %v348
    %350 = vmatprep.subr.mxu0 0.0
    %351 = vmatpush1.msra.mxu0 0.0
    %352 = vmatprep.subr.mxu0 0.0
    %353 = vmatpush1.msra.mxu0 0.0
    %354 = vmatprep.subr.mxu0 0.0
    %355 = vmatpush1.msra.mxu0 0.0
    %356 = vmatprep.subr.mxu0 0.0
    %357 = vmatpush1.msra.mxu0 0.0
    %358 = vmatprep.subr.mxu0 0.0
    %359 = vmatpush1.msra.mxu0 0.0
    %360 = vmatprep.subr.mxu0 0.0
    %361 = vmatpush1.msra.mxu0 0.0
    %362 = vmatprep.subr.mxu0 0.0
    %363 = vmatpush1.msra.mxu0 0.0
    %364 = vmatprep.subr.mxu0 0.0
    %365 = vmatpush1.msra.mxu0 0.0
    %366 = vmatprep.subr.mxu0 0.0
    %367 = vmatpush1.msra.mxu0 0.0
    %368 = vmatprep.subr.mxu0 0.0
    %369 = vmatpush1.msra.mxu0 0.0
    %370 = vmatprep.subr.mxu0 0.0
    %371 = vmatpush1.msra.mxu0 0.0
    %372 = vmatprep.subr.mxu0 0.0
    %373 = vmatpush1.msra.mxu0 0.0
    %374 = vmatprep.subr.mxu0 0.0
    %375 = vmatpush1.msra.mxu0 0.0
    %376 = vmatprep.subr.mxu0 0.0
    %377 = vmatpush1.msra.mxu0 0.0
    %378 = vmatprep.subr.mxu0 0.0
    %379 = vmatpush1.msra.mxu0 0.0
    %380 = vmatprep.subr.mxu0 0.0
    %381 = vmatpush1.msra.mxu0 0.0
    %382 = vmatprep.subr.mxu0 0.0
    %383 = vmatpush1.msra.mxu0 0.0
    %384 = vmatprep.subr.mxu0 0.0
    %385 = vmatpush1.msra.mxu0 0.0
    %386 = vmatprep.subr.mxu0 0.0
    %387 = vmatpush1.msra.mxu0 0.0
    %388 = vmatprep.subr.mxu0 0.0
    %389 = vmatpush1.msra.mxu0 0.0
    %390 = vmatprep.subr.mxu0 0.0
    %391 = vmatpush1.msra.mxu0 0.0
    %392 = vmatprep.subr.mxu0 0.0
    %393 = vmatpush1.msra.mxu0 0.0
    %394 = vmatprep.subr.mxu0 0.0
    %395 = vmatpush1.msra.mxu0 0.0
    %396 = vmatprep.subr.mxu0 0.0
    %397 = vmatpush1.msra.mxu0 0.0
    %398 = vmatprep.subr.mxu0 0.0
    %399 = vmatpush1.msra.mxu0 0.0
    %400 = vmatprep.subr.mxu0 0.0
    %401 = vmatpush1.msra.mxu0 0.0
    %402 = vmatprep.subr.mxu0 0.0
    %403 = vmatpush1.msra.mxu0 0.0
    %404 = vmatprep.subr.mxu0 0.0
    %405 = vmatpush1.msra.mxu0 0.0
    %406 = vmatprep.mubr.f32.mxu0 0.0
    %v407 = vand.u32 %v60, 4294901760
    %v408 = vsub.f32 %v60, %v407
    %v409 = vand.u32 %v408, 4294901760
    %410 = vmatmul.mubr.f32.gmra.mrb[0].mxu0 %v409
    %v411 = vpop.f32.mrb[0].mxu0
    %v412 = vadd.f32 %v328, %v411
    %v413 = vpop.f32.mrb[0].mxu0
    %414 = vmatprep.mubr.f32.mxu0 0.0
    %v415 = vand.u32 %v63, 4294901760
    %v416 = vsub.f32 %v63, %v415
    %v417 = vand.u32 %v416, 4294901760
    %418 = vmatmul.mubr.f32.gmra.mrb[0].mxu0 %v417
    %v419 = vpop.f32.mrb[0].mxu0
    %v420 = vadd.f32 %v335, %v419
    %v421 = vpop.f32.mrb[0].mxu0
    %422 = vdwg.mxu0
    %423 = vmatprep.subr.mxu0 0.0
    %v424 = vand.u32 %v47, 4294901760
    %v425 = vsub.f32 %v47, %v424
    %v426 = vand.u32 %v425, 4294901760
    %427 = vmatpush1.msra.mxu0 %v426
    %428 = vmatprep.subr.mxu0 0.0
    %v429 = vand.u32 %v48, 4294901760
    %v430 = vsub.f32 %v48, %v429
    %v431 = vand.u32 %v430, 4294901760
    %432 = vmatpush1.msra.mxu0 %v431
    %433 = vmatprep.subr.mxu0 0.0
    %v434 = vand.u32 %v49, 4294901760
    %v435 = vsub.f32 %v49, %v434
    %v436 = vand.u32 %v435, 4294901760
    %437 = vmatpush1.msra.mxu0 %v436
    %438 = vmatprep.subr.mxu0 0.0
    %v439 = vand.u32 %v50, 4294901760
    %v440 = vsub.f32 %v50, %v439
    %v441 = vand.u32 %v440, 4294901760
    %442 = vmatpush1.msra.mxu0 %v441
    %443 = vmatprep.subr.mxu0 0.0
    %444 = vmatpush1.msra.mxu0 0.0
    %445 = vmatprep.subr.mxu0 0.0
    %446 = vmatpush1.msra.mxu0 0.0
    %447 = vmatprep.subr.mxu0 0.0
    %448 = vmatpush1.msra.mxu0 0.0
    %449 = vmatprep.subr.mxu0 0.0
    %450 = vmatpush1.msra.mxu0 0.0
    %451 = vmatprep.subr.mxu0 0.0
    %452 = vmatpush1.msra.mxu0 0.0
    %453 = vmatprep.subr.mxu0 0.0
    %454 = vmatpush1.msra.mxu0 0.0
    %455 = vmatprep.subr.mxu0 0.0
    %456 = vmatpush1.msra.mxu0 0.0
    %457 = vmatprep.subr.mxu0 0.0
    %458 = vmatpush1.msra.mxu0 0.0
    %459 = vmatprep.subr.mxu0 0.0
    %460 = vmatpush1.msra.mxu0 0.0
    %461 = vmatprep.subr.mxu0 0.0
    %462 = vmatpush1.msra.mxu0 0.0
    %463 = vmatprep.subr.mxu0 0.0
    %464 = vmatpush1.msra.mxu0 0.0
    %465 = vmatprep.subr.mxu0 0.0
    %466 = vmatpush1.msra.mxu0 0.0
    %467 = vmatprep.subr.mxu0 0.0
    %468 = vmatpush1.msra.mxu0 0.0
    %469 = vmatprep.subr.mxu0 0.0
    %470 = vmatpush1.msra.mxu0 0.0
    %471 = vmatprep.subr.mxu0 0.0
    %472 = vmatpush1.msra.mxu0 0.0
    %473 = vmatprep.subr.mxu0 0.0
    %474 = vmatpush1.msra.mxu0 0.0
    %475 = vmatprep.subr.mxu0 0.0
    %476 = vmatpush1.msra.mxu0 0.0
    %477 = vmatprep.subr.mxu0 0.0
    %478 = vmatpush1.msra.mxu0 0.0
    %479 = vmatprep.subr.mxu0 0.0
    %480 = vmatpush1.msra.mxu0 0.0
    %481 = vmatprep.subr.mxu0 0.0
    %482 = vmatpush1.msra.mxu0 0.0
    %483 = vmatprep.subr.mxu0 0.0
    %484 = vmatpush1.msra.mxu0 0.0
    %485 = vmatprep.subr.mxu0 0.0
    %486 = vmatpush1.msra.mxu0 0.0
    %487 = vmatprep.subr.mxu0 0.0
    %488 = vmatpush1.msra.mxu0 0.0
    %489 = vmatprep.subr.mxu0 0.0
    %490 = vmatpush1.msra.mxu0 0.0
    %491 = vmatprep.subr.mxu0 0.0
    %492 = vmatpush1.msra.mxu0 0.0
    %493 = vmatprep.subr.mxu0 0.0
    %494 = vmatpush1.msra.mxu0 0.0
    %495 = vmatprep.subr.mxu0 0.0
    %496 = vmatpush1.msra.mxu0 0.0
    %497 = vmatprep.subr.mxu0 0.0
    %498 = vmatpush1.msra.mxu0 0.0
    %499 = vmatprep.mubr.f32.mxu0 0.0
    %v500 = vand.u32 %v60, 4294901760
    %501 = vmatmul.mubr.f32.gmra.mrb[0].mxu0 %v500
    %v502 = vpop.f32.mrb[0].mxu0
    %v503 = vadd.f32 %v412, %v502
    %v504 = vpop.f32.mrb[0].mxu0
    %505 = vmatprep.mubr.f32.mxu0 0.0
    %v506 = vand.u32 %v63, 4294901760
    %507 = vmatmul.mubr.f32.gmra.mrb[0].mxu0 %v506
    %v508 = vpop.f32.mrb[0].mxu0
    %v509 = vadd.f32 %v420, %v508
    %v510 = vpop.f32.mrb[0].mxu0
    %511 = vdwg.mxu0
    %512 = vmatprep.subr.mxu0 0.0
    %v513 = vand.u32 %v47, 4294901760
    %514 = vmatpush1.msra.mxu0 %v513
    %515 = vmatprep.subr.mxu0 0.0
    %v516 = vand.u32 %v48, 4294901760
    %517 = vmatpush1.msra.mxu0 %v516
    %518 = vmatprep.subr.mxu0 0.0
    %v519 = vand.u32 %v49, 4294901760
    %520 = vmatpush1.msra.mxu0 %v519
    %521 = vmatprep.subr.mxu0 0.0
    %v522 = vand.u32 %v50, 4294901760
    %523 = vmatpush1.msra.mxu0 %v522
    %524 = vmatprep.subr.mxu0 0.0
    %525 = vmatpush1.msra.mxu0 0.0
    %526 = vmatprep.subr.mxu0 0.0
    %527 = vmatpush1.msra.mxu0 0.0
    %528 = vmatprep.subr.mxu0 0.0
    %529 = vmatpush1.msra.mxu0 0.0
    %530 = vmatprep.subr.mxu0 0.0
    %531 = vmatpush1.msra.mxu0 0.0
    %532 = vmatprep.subr.mxu0 0.0
    %533 = vmatpush1.msra.mxu0 0.0
    %534 = vmatprep.subr.mxu0 0.0
    %535 = vmatpush1.msra.mxu0 0.0
    %536 = vmatprep.subr.mxu0 0.0
    %537 = vmatpush1.msra.mxu0 0.0
    %538 = vmatprep.subr.mxu0 0.0
    %539 = vmatpush1.msra.mxu0 0.0
    %540 = vmatprep.subr.mxu0 0.0
    %541 = vmatpush1.msra.mxu0 0.0
    %542 = vmatprep.subr.mxu0 0.0
    %543 = vmatpush1.msra.mxu0 0.0
    %544 = vmatprep.subr.mxu0 0.0
    %545 = vmatpush1.msra.mxu0 0.0
    %546 = vmatprep.subr.mxu0 0.0
    %547 = vmatpush1.msra.mxu0 0.0
    %548 = vmatprep.subr.mxu0 0.0
    %549 = vmatpush1.msra.mxu0 0.0
    %550 = vmatprep.subr.mxu0 0.0
    %551 = vmatpush1.msra.mxu0 0.0
    %552 = vmatprep.subr.mxu0 0.0
    %553 = vmatpush1.msra.mxu0 0.0
    %554 = vmatprep.subr.mxu0 0.0
    %555 = vmatpush1.msra.mxu0 0.0
    %556 = vmatprep.subr.mxu0 0.0
    %557 = vmatpush1.msra.mxu0 0.0
    %558 = vmatprep.subr.mxu0 0.0
    %559 = vmatpush1.msra.mxu0 0.0
    %560 = vmatprep.subr.mxu0 0.0
    %561 = vmatpush1.msra.mxu0 0.0
    %562 = vmatprep.subr.mxu0 0.0
    %563 = vmatpush1.msra.mxu0 0.0
    %564 = vmatprep.subr.mxu0 0.0
    %565 = vmatpush1.msra.mxu0 0.0
    %566 = vmatprep.subr.mxu0 0.0
    %567 = vmatpush1.msra.mxu0 0.0
    %568 = vmatprep.subr.mxu0 0.0
    %569 = vmatpush1.msra.mxu0 0.0
    %570 = vmatprep.subr.mxu0 0.0
    %571 = vmatpush1.msra.mxu0 0.0
    %572 = vmatprep.subr.mxu0 0.0
    %573 = vmatpush1.msra.mxu0 0.0
    %574 = vmatprep.subr.mxu0 0.0
    %575 = vmatpush1.msra.mxu0 0.0
    %576 = vmatprep.subr.mxu0 0.0
    %577 = vmatpush1.msra.mxu0 0.0
    %578 = vmatprep.subr.mxu0 0.0
    %579 = vmatpush1.msra.mxu0 0.0
    %580 = vmatprep.mubr.f32.mxu0 0.0
    %v581 = vand.u32 %v60, 4294901760
    %582 = vmatmul.mubr.f32.gmra.mrb[0].mxu0 %v581
    %v583 = vpop.f32.mrb[0].mxu0
    %v584 = vadd.f32 %v503, %v583
    %v585 = vpop.f32.mrb[0].mxu0
    %586 = vmatprep.mubr.f32.mxu0 0.0
    %v587 = vand.u32 %v63, 4294901760
    %588 = vmatmul.mubr.f32.gmra.mrb[0].mxu0 %v587
    %v589 = vpop.f32.mrb[0].mxu0
    %v590 = vadd.f32 %v509, %v589
    %v591 = vpop.f32.mrb[0].mxu0
    %592 = vdwg.mxu0
    %v593 = vmax.f32 %v584, 0.0
    %v594 = vmax.f32 %v590, 0.0
    %vm595 = vcmask 523264
    %596 = vst.msk [vmem:[#allocation9] sm:$0xff] %vm595, %v593
    %597 = vst.msk [vmem:[#allocation9 + $0x8] sm:$0xff] %vm595, %v594
    // Predicated region
    $region22: #{tpu_custom_call.1} parent=1 // pred_check
      _
    $region23: #{tpu_custom_call.1} parent=1 // pred_check_branch
      %599 = sbr.rel (0) target = $region25
    $region24: #{tpu_custom_call.1} parent=1 // pred_region
      %s601 = ssub.s32 256, 256
      %602 = vsyncadd [#allocation6], %s601
      %s603 = sshll.u32 [#allocation9], 4
      %s604 = int_to_ptr.vmem [resolvable:$true] %s603
      %609 = dma.vmem_to_hbm [thread:$0]  %s604, 256, %s4, [#allocation6], 128, 128, 8
    $region25: #{tpu_custom_call.1} parent=1 // pred_fallthru
      _
    // Predicated region
    $region26: #{tpu_custom_call.1} parent=1 // pred_check
      _
    $region27: #{tpu_custom_call.1} parent=1 // pred_check_branch
      %611 = sbr.rel (0) target = $region29
    $region28: #{tpu_custom_call.1} parent=1 // pred_region
      %612 = dma.done [#allocation6], 256
    $region29: #{tpu_custom_call.1} parent=1 // pred_fallthru
      _
    %613 = vsyncpa [#allocation5], 1
    %614 = vsyncpa [#allocation8], 1
    %615 = vsyncpa [#allocation6], 1

</llo_original>
